<compile_context>
chip_gen: v6e
topology: v6e:2x2x1
jax: 0.10.0
libtpu: 0.0.40
codegen_flags: <defaults>
</compile_context>

<pallas_src>
import functools

import jax
import jax.numpy as jnp
from jax.experimental import pallas as pl
from jax.experimental.pallas import tpu as pltpu


# ----------------------------- kernel bodies --------------------------------


def _block_partial(xhat_ref, x_ref, *, batch, block_rows):
    """Per-row NMSE for one (TB, F) block, masked + summed to a scalar."""
    x = x_ref[...].astype(jnp.float32)
    # The -0.5 centering cancels in (x - x_hat); only the power term needs it.
    diff = x - xhat_ref[...].astype(jnp.float32)
    xc = x - 0.5

    power = jnp.sum(xc * xc, axis=-1, keepdims=True)     # (TB, 1)
    mse = jnp.sum(diff * diff, axis=-1, keepdims=True)   # (TB, 1)

    if batch % block_rows == 0:
        nmse_rows = mse / power
    else:
        # Last block is padded: mask mse and clamp power before dividing so
        # padded rows never produce inf/NaN (0/0) even transiently.
        row = jax.lax.broadcasted_iota(jnp.int32, (block_rows, 1), 0)
        valid = (pl.program_id(0) * block_rows + row) < batch
        nmse_rows = jnp.where(valid, mse, 0.0) / jnp.where(valid, power, 1.0)

    return jnp.sum(nmse_rows)


def _nmse_partials_kernel(xhat_ref, x_ref, out_ref, *, batch, block_rows):
    """Independent-blocks variant (dual-TC chips): one partial per block."""
    partial = _block_partial(xhat_ref, x_ref, batch=batch, block_rows=block_rows)
    sub = jax.lax.broadcasted_iota(jnp.int32, (1, 8, 128), 1)
    lane = jax.lax.broadcasted_iota(jnp.int32, (1, 8, 128), 2)
    out_ref[...] = jnp.where((sub == 0) & (lane == 0), partial, 0.0)


def _nmse_acc_kernel(xhat_ref, x_ref, out_ref, *, batch, block_rows):
    """Accumulator variant (single-TC chips): one resident output block."""
    i = pl.program_id(0)

    @pl.when(i == 0)
    def _():
        out_ref[...] = jnp.zeros_like(out_ref)

    partial = _block_partial(xhat_ref, x_ref, batch=batch, block_rows=block_rows)
    sub = jax.lax.broadcasted_iota(jnp.int32, (8, 128), 0)
    lane = jax.lax.broadcasted_iota(jnp.int32, (8, 128), 1)
    out_ref[...] += jnp.where((sub == 0) & (lane == 0), partial, 0.0)


# ------------------------------ configuration -------------------------------


def _round_up(n, m):
    return ((n + m - 1) // m) * m


def _tpu_config():
    """Generation-aware VMEM budget / limit / grid-granularity choices."""
    try:
        vmem = int(pltpu.get_tpu_info().vmem_capacity_bytes)
    except Exception:  # interpret mode / unknown backend: conservative default
        vmem = 128 * 1024 * 1024
    if vmem <= 64 * 1024 * 1024:
        # v7x-class: 64 MiB physical VMEM, 2 TensorCores per chip.
        #   8 MiB/input/buffer => 2 inputs x 2 buffers = 32 MiB pipelined,
        #   44 MiB scoped limit leaves headroom for internal f32 scratch.
        return dict(
            budget_bytes=8 * 1024 * 1024,
            vmem_limit_bytes=44 * 1024 * 1024,
            min_blocks=4,          # shard across both TCs + pipeline
            use_partials=True,     # 'parallel' partials beat the epilogue here
        )
    # v5e / v6e: 128 MiB physical VMEM, single TensorCore.
    return dict(
        budget_bytes=8 * 1024 * 1024,
        vmem_limit_bytes=64 * 1024 * 1024,
        min_blocks=2,              # >=2 steps so the auto-pipeline overlaps DMA
        use_partials=False,        # accumulator output, no epilogue reduction
    )


def _choose_block_rows(batch, feat, in_itemsize, budget_bytes, min_blocks,
                       max_rows_per_block=None):
    """Batch-tile rows: VMEM-budgeted, >=min_blocks grid steps when possible,
    multiple of 8 (sublanes) or the full batch dim."""
    # Size against f32 rows: the kernel upcasts, so this keeps the internal
    # scratch conservative even for bf16 inputs.
    row_bytes = feat * max(int(in_itemsize), 4)
    tb = max(1, budget_bytes // row_bytes)
    if min_blocks > 1:
        tb = min(tb, max(8, _round_up(pl.cdiv(batch, min_blocks), 8)))
    if max_rows_per_block is not None:
        tb = min(tb, max_rows_per_block)
    if tb >= batch:
        return batch
    return max(8, (tb // 8) * 8)


# -------------------------------- wrapper ------------------------------------


def nmse_loss(x_hat, x, reduction="sum", max_rows_per_block=None):
    """NMSELoss.forward(x_hat, x) — inputs NCHW (B, 2, H, W)."""
    assert x.shape == x_hat.shape
    B, C, H, W = x.shape
    assert C == 2, "channel dim must be 2 (real/imag)"
    F = C * H * W

    # Free reshape for contiguous NCHW: rows are (real ++ imag) per sample.
    xh2 = x_hat.reshape(B, F)
    x2 = x.reshape(B, F)

    cfg = _tpu_config()
    tb = _choose_block_rows(B, F, jnp.dtype(x.dtype).itemsize,
                            cfg["budget_bytes"], cfg["min_blocks"],
                            max_rows_per_block)
    num_blocks = pl.cdiv(B, tb)
    # TODO(synk): if a single row of 8 samples (8 * C*H*W f32) ever exceeds the
    # VMEM budget, add a second grid axis tiling the feature dim with a (TB, 1)
    # scratch accumulator.

    in_specs = [
        pl.BlockSpec((tb, F), lambda i: (i, 0)),  # x_hat
        pl.BlockSpec((tb, F), lambda i: (i, 0)),  # x
    ]

    if cfg["use_partials"] and num_blocks > 1:
        # Dual-TC path: independent per-block partials, 'parallel' grid axis.
        kernel = functools.partial(_nmse_partials_kernel, batch=B, block_rows=tb)
        partials = pl.pallas_call(
            kernel,
            out_shape=jax.ShapeDtypeStruct((num_blocks, 8, 128), jnp.float32),
            grid_spec=pltpu.PrefetchScalarGridSpec(
                num_scalar_prefetch=0,
                grid=(num_blocks,),
                in_specs=in_specs,
                out_specs=pl.BlockSpec((1, 8, 128), lambda i: (i, 0, 0)),
            ),
            compiler_params=pltpu.CompilerParams(
                dimension_semantics=("parallel",),
                vmem_limit_bytes=cfg["vmem_limit_bytes"],
            ),
        )(xh2, x2)
        # Only [:, 0, 0] is nonzero; a dense full-array sum avoids the strided
        # gather and is cheaper for XLA than partials[:, 0, 0].sum().
        total = jnp.sum(partials)
    else:
        # Single-TC path (or single block): resident accumulator output block.
        kernel = functools.partial(_nmse_acc_kernel, batch=B, block_rows=tb)
        out = pl.pallas_call(
            kernel,
            out_shape=jax.ShapeDtypeStruct((8, 128), jnp.float32),
            grid_spec=pltpu.PrefetchScalarGridSpec(
                num_scalar_prefetch=0,
                grid=(num_blocks,),
                in_specs=in_specs,
                out_specs=pl.BlockSpec((8, 128), lambda i: (0, 0)),
            ),
            compiler_params=pltpu.CompilerParams(
                dimension_semantics=("arbitrary",),
                vmem_limit_bytes=cfg["vmem_limit_bytes"],
            ),
        )(xh2, x2)
        total = out[0, 0]

    if reduction == "mean":
        total = total / B
    return total


# ------------------------------- reference -----------------------------------


def _nmse_ref(x_hat, x, reduction="sum"):
    """Pure-JAX reference replicating NMSE_cuda + NMSELoss."""
    B = x.shape[0]
    xr = x[:, 0].reshape(B, -1) - 0.5
    xi = x[:, 1].reshape(B, -1) - 0.5
    xhr = x_hat[:, 0].reshape(B, -1) - 0.5
    xhi = x_hat[:, 1].reshape(B, -1) - 0.5
    power = jnp.sum(xr**2 + xi**2, axis=1)
    mse = jnp.sum((xr - xhr) ** 2 + (xi - xhi) ** 2, axis=1)
    nmse = mse / power
    return jnp.mean(nmse) if reduction == "mean" else jnp.sum(nmse)


if __name__ == "__main__":
    key = jax.random.PRNGKey(0)
    k1, k2, k3, k4 = jax.random.split(key, 4)

    # Small shapes consistent with the module: NCHW with C=2 (real/imag).
    B, C, H, W = 2, 2, 16, 16
    # CSI-style inputs normalized to [0, 1] (hence the -0.5 centering).
    x = jax.random.uniform(k1, (B, C, H, W), dtype=jnp.float32)
    x_hat = jax.random.uniform(k2, (B, C, H, W), dtype=jnp.float32)

    out = jax.block_until_ready(nmse_loss(x_hat, x, reduction="sum"))
    ref = _nmse_ref(x_hat, x, reduction="sum")
    assert jnp.allclose(out, ref, rtol=1e-5, atol=1e-5), (out, ref)

    # Multi-block + ragged batch (B % TB != 0) exercises the masked path and
    # the multi-step pipeline (accumulator on v5e/v6e, partials on v7x).
    B2 = 10
    x_b = jax.random.uniform(k3, (B2, C, H, W), dtype=jnp.float32)
    xh_b = jax.random.uniform(k4, (B2, C, H, W), dtype=jnp.float32)
    out2 = jax.block_until_ready(
        nmse_loss(xh_b, x_b, reduction="mean", max_rows_per_block=8)
    )
    ref2 = _nmse_ref(xh_b, x_b, reduction="mean")
    assert jnp.allclose(out2, ref2, rtol=1e-5, atol=1e-5), (out2, ref2)

    print("KERNEL_OK")
</pallas_src>

<mosaic_0001>
module attributes {stable_mosaic.version = 11 : i64} {
  func.func @_nmse_acc_kernel(%arg0: i32, %arg1: memref<2x512xf32, #tpu.memory_space<vmem>>, %arg2: memref<2x512xf32, #tpu.memory_space<vmem>>, %arg3: memref<8x128xf32, #tpu.memory_space<vmem>>) attributes {dimension_semantics = [#tpu.dimension_semantics<arbitrary>], iteration_bounds = array<i64: 1>, scalar_prefetch = 0 : i64, scratch_operands = 0 : i64, tpu.core_type = #tpu.core_type<tc>, window_params = [{transform_indices = @transform_0, window_bounds = array<i64: 2, 512>}, {transform_indices = @transform_1, window_bounds = array<i64: 2, 512>}, {pipeline_mode = #tpu.pipeline_mode<synchronous>, transform_indices = @transform_2, window_bounds = array<i64: 8, 128>}]} {
    %c0_i32 = arith.constant 0 : i32
    %0 = arith.cmpi eq, %arg0, %c0_i32 : i32
    %1 = arith.extui %0 : i1 to i32
    %c0_i32_0 = arith.constant 0 : i32
    %2 = arith.cmpi ne, %1, %c0_i32_0 : i32
    scf.if %2 {
      %cst_14 = arith.constant 0.000000e+00 : f32
      %32 = vector.broadcast %cst_14 : f32 to vector<8x128xf32>
      %c0_15 = arith.constant 0 : index
      %c0_16 = arith.constant 0 : index
      %33 = vector.load %arg3[%c0_15, %c0_16] : memref<8x128xf32, #tpu.memory_space<vmem>>, vector<8x128xf32>
      tpu.vector_store %arg3[%c0_15, %c0_16], %32 {strides = array<i32>} : memref<8x128xf32, #tpu.memory_space<vmem>>, vector<8x128xf32>,
    } else {
    }
    %c0 = arith.constant 0 : index
    %c0_1 = arith.constant 0 : index
    %3 = vector.load %arg2[%c0, %c0_1] : memref<2x512xf32, #tpu.memory_space<vmem>>, vector<2x512xf32>
    %c0_2 = arith.constant 0 : index
    %c0_3 = arith.constant 0 : index
    %4 = vector.load %arg1[%c0_2, %c0_3] : memref<2x512xf32, #tpu.memory_space<vmem>>, vector<2x512xf32>
    %5 = arith.subf %3, %4 : vector<2x512xf32>
    %cst = arith.constant 5.000000e-01 : f32
    %6 = vector.broadcast %cst : f32 to vector<2x512xf32>
    %7 = arith.subf %3, %6 : vector<2x512xf32>
    %8 = arith.mulf %7, %7 : vector<2x512xf32>
    %cst_4 = arith.constant dense<0.000000e+00> : vector<2xf32>
    %9 = vector.multi_reduction <add>, %8, %cst_4 [1] : vector<2x512xf32> to vector<2xf32>
    %10 = vector.shape_cast %9 : vector<2xf32> to vector<2x1xf32>
    %11 = arith.mulf %5, %5 : vector<2x512xf32>
    %cst_5 = arith.constant dense<0.000000e+00> : vector<2xf32>
    %12 = vector.multi_reduction <add>, %11, %cst_5 [1] : vector<2x512xf32> to vector<2xf32>
    %13 = vector.shape_cast %12 : vector<2xf32> to vector<2x1xf32>
    %14 = arith.divf %13, %10 : vector<2x1xf32>
    %15 = vector.shape_cast %14 : vector<2x1xf32> to vector<1x2x1xf32>
    %cst_6 = arith.constant dense<0.000000e+00> : vector<1xf32>
    %16 = vector.multi_reduction <add>, %15, %cst_6 [1, 2] : vector<1x2x1xf32> to vector<1xf32>
    %17 = vector.shape_cast %16 : vector<1xf32> to vector<1x1x1xf32>
    %18 = vector.extract %17[0, 0, 0] : f32 from vector<1x1x1xf32>
    %19 = tpu.iota {dimensions = array<i32: 0>} : vector<8x128xi32>
    %20 = tpu.iota {dimensions = array<i32: 1>} : vector<8x128xi32>
    %c0_7 = arith.constant 0 : index
    %c0_8 = arith.constant 0 : index
    %21 = vector.load %arg3[%c0_7, %c0_8] : memref<8x128xf32, #tpu.memory_space<vmem>>, vector<8x128xf32>
    %c0_i32_9 = arith.constant 0 : i32
    %22 = vector.broadcast %c0_i32_9 : i32 to vector<8x128xi32>
    %23 = arith.cmpi eq, %19, %22 : vector<8x128xi32>
    %c0_i32_10 = arith.constant 0 : i32
    %24 = vector.broadcast %c0_i32_10 : i32 to vector<8x128xi32>
    %25 = arith.cmpi eq, %20, %24 : vector<8x128xi32>
    %26 = arith.andi %23, %25 : vector<8x128xi1>
    %cst_11 = arith.constant 0.000000e+00 : f32
    %27 = vector.broadcast %18 : f32 to vector<8x128xf32>
    %28 = vector.broadcast %cst_11 : f32 to vector<8x128xf32>
    %29 = arith.select %26, %27, %28 : vector<8x128xi1>, vector<8x128xf32>
    %30 = arith.addf %21, %29 : vector<8x128xf32>
    %c0_12 = arith.constant 0 : index
    %c0_13 = arith.constant 0 : index
    %31 = vector.load %arg3[%c0_12, %c0_13] : memref<8x128xf32, #tpu.memory_space<vmem>>, vector<8x128xf32>
    tpu.vector_store %arg3[%c0_12, %c0_13], %30 {strides = array<i32>} : memref<8x128xf32, #tpu.memory_space<vmem>>, vector<8x128xf32>,
    return
  }
  func.func @transform_0(%arg0: i32) -> (i32, i32) {
    %c0_i32 = arith.constant 0 : i32
    %c0_i32_0 = arith.constant 0 : i32
    return %arg0, %c0_i32 : i32, i32
  }
  func.func @transform_1(%arg0: i32) -> (i32, i32) {
    %c0_i32 = arith.constant 0 : i32
    %c0_i32_0 = arith.constant 0 : i32
    return %arg0, %c0_i32 : i32, i32
  }
  func.func @transform_2(%arg0: i32) -> (i32, i32) {
    %c0_i32 = arith.constant 0 : i32
    %c0_i32_0 = arith.constant 0 : i32
    %c0_i32_1 = arith.constant 0 : i32
    return %c0_i32, %c0_i32_0 : i32, i32
  }
}

</mosaic_0001>

<llo_original>
// kernel: tpu_custom_call.1
$region0: #{tpu_custom_call.1}
  #allocation0 [shape = 'u32[]', space=smem, size = 0x4, offset = 0x4, fixed_abs, tag = 'smem constant byte address 0x4 - core index']
  #allocation1 [shape = 'u32[144,128]{1,0:T(1,128)}', space=vmem, size = 0x12000, scoped, tag = 'internal scratch']
  %s0 = inlined_call_operand.hbm [shape: f32[2,512], index: 0, kind: input, shape index: {}]
  %s1 = inlined_call_operand.hbm [shape: f32[2,512], index: 1, kind: input, shape index: {}]
  %s2 = inlined_call_operand.hbm [shape: f32[8,128], index: 2, kind: output, shape index: {}]
  %s3 = sld [smem:[#allocation0]]
  $region30: #{tpu_custom_call.1} parent=0
    _
  %s5 = ssub.s32 1, %s3
  %s6 = scalar_select 0, %s5, %s3
  $region1: #{tpu_custom_call.1} parent=0
    #allocation2 [shape = 'u8[4096]{0}', space=vmem, size = 0x1000, scoped, tag = 'input window, operand 0, single buffered']
    #allocation3 [shape = 's32[1]{0}', space=sflag, size = 0x4, scoped, tag = 'scoped memory for tpu_custom_call.1']
    #allocation4 [shape = 's32[1]{0}', space=sflag, size = 0x4, scoped, tag = 'scoped memory for tpu_custom_call.1']
    #allocation5 [shape = 'u8[4096]{0}', space=vmem, size = 0x1000, scoped, tag = 'input window, operand 1, single buffered']
    #allocation6 [shape = 's32[1]{0}', space=sflag, size = 0x4, scoped, tag = 'scoped memory for tpu_custom_call.1']
    #allocation7 [shape = 'u8[4096]{0}', space=vmem, size = 0x1000, scoped, tag = 'output window, operand 0, single buffered']
    %7 = vsyncpa [#allocation3], 0
    %8 = vsyncpa [#allocation6], 0
    %9 = vsyncpa [#allocation4], 0
    // Predicated region
    $region2: #{tpu_custom_call.1} parent=1 // pred_check
      _
    $region3: #{tpu_custom_call.1} parent=1 // pred_check_branch
      %11 = sbr.rel (0) target = $region5
    $region4: #{tpu_custom_call.1} parent=1 // pred_region
      %s13 = ssub.s32 128, 128
      %14 = vsyncadd [#allocation3], %s13
      %s16 = sshll.u32 [#allocation2], 4
      %s17 = int_to_ptr.vmem [resolvable:$true] %s16
      %19 = dma.hbm_to_vmem [thread:$0]  %s0, 128, %s17, [#allocation3]
    $region5: #{tpu_custom_call.1} parent=1 // pred_fallthru
      _
    // Predicated region
    $region6: #{tpu_custom_call.1} parent=1 // pred_check
      _
    $region7: #{tpu_custom_call.1} parent=1 // pred_check_branch
      %21 = sbr.rel (0) target = $region9
    $region8: #{tpu_custom_call.1} parent=1 // pred_region
      %s23 = ssub.s32 128, 128
      %24 = vsyncadd [#allocation6], %s23
      %s26 = sshll.u32 [#allocation5], 4
      %s27 = int_to_ptr.vmem [resolvable:$true] %s26
      %29 = dma.hbm_to_vmem [thread:$0]  %s1, 128, %s27, [#allocation6]
    $region9: #{tpu_custom_call.1} parent=1 // pred_fallthru
      _
    // Predicated region
    $region10: #{tpu_custom_call.1} parent=1 // pred_check
      _
    $region11: #{tpu_custom_call.1} parent=1 // pred_check_branch
      %31 = sbr.rel (0) target = $region13
    $region12: #{tpu_custom_call.1} parent=1 // pred_region
      %32 = dma.done [#allocation3], 128
    $region13: #{tpu_custom_call.1} parent=1 // pred_fallthru
      _
    // Predicated region
    $region14: #{tpu_custom_call.1} parent=1 // pred_check
      _
    $region15: #{tpu_custom_call.1} parent=1 // pred_check_branch
      %34 = sbr.rel (0) target = $region17
    $region16: #{tpu_custom_call.1} parent=1 // pred_region
      %35 = dma.done [#allocation6], 128
    $region17: #{tpu_custom_call.1} parent=1 // pred_fallthru
      _
    %p36 = scmp.eq.s32.totalorder 0, 0
    // Predicated region
    $region18: #{tpu_custom_call.1} parent=1 // pred_check
      %p37 = pneg %p36
    $region19: #{tpu_custom_call.1} parent=1 // pred_check_branch
      %39 = sbr.rel (%p37) target = $region21
    $region20: #{tpu_custom_call.1} parent=1 // pred_region
      %40 = vst [vmem:[#allocation7] sm:$0xff] 0.0
    $region21: #{tpu_custom_call.1} parent=1 // pred_fallthru
      _
    %v41 = vld [vmem:[#allocation5] sm:$0xff]
    %v42 = vld [vmem:[#allocation2] sm:$0xff]
    %v43 = vsub.f32 %v41, %v42
    %v44 = vsub.f32 %v41, 0.5
    %v45 = vmul.f32 %v44, %v44
    %v47 = vcombine.high %v45, %v45
    %v49 = vunpack.c.l.s4 1983009808
    %v50 = vunpack.c.0.s8 %v49
    %v51 = vlaneseq
    %v52 = vshrl.u32 %v51, 7
    %v53 = vsub.s32 %v50, %v52
    %v54 = vrot.slane %v45, %v53
    %v56 = vunpack.c.l.s4 1983009808
    %v57 = vunpack.c.0.s8 %v56
    %v58 = vlaneseq
    %v59 = vshrl.u32 %v58, 7
    %v60 = vsub.s32 %v57, %v59
    %v61 = vrot.slane %v47, %v60
    %v62 = vcombine.high %v54, %v54
    %v63 = vcombine.high %v61, %v61
    %vm68 = vcmask 1041408
    %v69 = vsel %vm68, %v54, 0.0
    %v70 = vsel %vm68, %v62, 0.0
    %v71 = vadd.f32 %v69, %v70
    %v72 = vsel %vm68, %v61, 0.0
    %v73 = vadd.f32 %v71, %v72
    %v74 = vsel %vm68, %v63, 0.0
    %v75 = vadd.f32 %v73, %v74
    %76 = vadd.xlane.f32.xlu0 %v75
    %v77 = vpop.xlane.xlu0 %76
    %v78 = vmul.f32 %v43, %v43
    %v80 = vcombine.high %v78, %v78
    %v82 = vunpack.c.l.s4 1983009808
    %v83 = vunpack.c.0.s8 %v82
    %v84 = vlaneseq
    %v85 = vshrl.u32 %v84, 7
    %v86 = vsub.s32 %v83, %v85
    %v87 = vrot.slane %v78, %v86
    %v89 = vunpack.c.l.s4 1983009808
    %v90 = vunpack.c.0.s8 %v89
    %v91 = vlaneseq
    %v92 = vshrl.u32 %v91, 7
    %v93 = vsub.s32 %v90, %v92
    %v94 = vrot.slane %v80, %v93
    %v95 = vcombine.high %v87, %v87
    %v96 = vcombine.high %v94, %v94
    %v101 = vsel %vm68, %v87, 0.0
    %v102 = vsel %vm68, %v95, 0.0
    %v103 = vadd.f32 %v101, %v102
    %v104 = vsel %vm68, %v94, 0.0
    %v105 = vadd.f32 %v103, %v104
    %v106 = vsel %vm68, %v96, 0.0
    %v107 = vadd.f32 %v105, %v106
    %108 = vadd.xlane.f32.xlu0 %v107
    %v109 = vpop.xlane.xlu0 %108
    %v110 = vrcp.pop %v77
    %v111 = vmul.f32 %v109, %v110
    %vm112 = vcmask 1024
    %v113 = vsel %vm112, %v111, 0.0
    %114 = vadd.xlane.f32.xlu0 %v113
    %v115 = vpop.xlane.xlu0 %114
    %v116 = vrot.slane %v115, 4
    %v117 = vadd.f32 %v115, %v116
    %v118 = vrot.slane %v117, 2
    %v119 = vadd.f32 %v117, %v118
    %v120 = vrot.slane %v119, 1
    %v121 = vadd.f32 %v119, %v120
    %s122 = vtos %v121
    %v123 = vlaneseq
    %v124 = vshrl.u32 %v123, 7
    %v125 = vlaneseq
    %v126 = vand.u32 %v125, 127
    %v127 = vld [vmem:[#allocation7] sm:$0xff]
    %vm128 = vcmp.eq.s32.totalorder %v124, 0
    %vm129 = vcmp.eq.s32.totalorder %v126, 0
    %vm130 = vmand %vm128, %vm129
    %v131 = vstv %s122
    %v132 = vsel %vm130, %v131, 0.0
    %v133 = vadd.f32 %v127, %v132
    %134 = vst [vmem:[#allocation7] sm:$0xff] %v133
    // Predicated region
    $region22: #{tpu_custom_call.1} parent=1 // pred_check
      _
    $region23: #{tpu_custom_call.1} parent=1 // pred_check_branch
      %136 = sbr.rel (0) target = $region25
    $region24: #{tpu_custom_call.1} parent=1 // pred_region
      %s138 = ssub.s32 128, 128
      %139 = vsyncadd [#allocation4], %s138
      %s141 = sshll.u32 [#allocation7], 4
      %s142 = int_to_ptr.vmem [resolvable:$true] %s141
      %144 = dma.vmem_to_hbm [thread:$0]  %s142, 128, %s2, [#allocation4]
    $region25: #{tpu_custom_call.1} parent=1 // pred_fallthru
      _
    // Predicated region
    $region26: #{tpu_custom_call.1} parent=1 // pred_check
      _
    $region27: #{tpu_custom_call.1} parent=1 // pred_check_branch
      %146 = sbr.rel (0) target = $region29
    $region28: #{tpu_custom_call.1} parent=1 // pred_region
      %147 = dma.done [#allocation4], 128
    $region29: #{tpu_custom_call.1} parent=1 // pred_fallthru
      _
    %148 = vsyncpa [#allocation3], 1
    %149 = vsyncpa [#allocation6], 1
    %150 = vsyncpa [#allocation4], 1

</llo_original>
